<compile_context>
chip_gen: v7x
topology: tpu7x:2x2x1
jax: 0.10.0
libtpu: 0.0.40
codegen_flags: <defaults>
</compile_context>

<pallas_src>
import functools

import jax
import jax.numpy as jnp
from jax.experimental import pallas as pl
from jax.experimental.pallas import tpu as pltpu

_LANES = 128
_SUBLANES = 8


def _round_up(v, m):
    return ((v + m - 1) // m) * m


def _logreg_kernel(x_ref, w_ref, b_ref, o_ref, *, lin: bool):
    # x_ref: (tg, R*D)  folded input rows (native dtype), streamed batch tile
    # w_ref: (R*D, R)   block-diagonal weight, resident across grid steps
    # b_ref: (1, 1)     f32 bias scalar in SMEM
    # o_ref: (tg, R)    f32 output tile (lane-dense for R >= 32)
    x = x_ref[...]
    if x.dtype != w_ref.dtype:
        x = x.astype(w_ref.dtype)
    # MXU contraction (vector-extended slot), f32 accumulation.
    z = jnp.dot(x, w_ref[...], preferred_element_type=jnp.float32) + b_ref[0, 0]
    if lin:
        out = (z > 0.5).astype(jnp.float32)        # (linear(x) > 0.5).float()
    else:
        out = 1.0 / (1.0 + jnp.exp(-z))            # torch.sigmoid(linear(x))
    o_ref[...] = out.astype(o_ref.dtype)


def _choose_fold(B, D, *, r_max=64, w_big_budget_bytes=2 << 20):
    """Largest power-of-two R <= r_max dividing B with (R*D, R) weight <= budget."""
    r = 1
    while (r < r_max and B % (2 * r) == 0
           and (2 * r) * (2 * r) * D * 4 <= w_big_budget_bytes):
        r *= 2
    return r


def _choose_group_tile(G, folded_row_vmem_bytes, *, target_bytes=4 << 20, min_tiles=4):
    """~target_bytes of (lane-padded) x per grid step; keep a few steps for
    pipelining and v7x's two TensorCores when the batch is big enough."""
    tg = (target_bytes // folded_row_vmem_bytes) // _SUBLANES * _SUBLANES
    tg = max(_SUBLANES, tg)
    balanced = _round_up(pl.cdiv(G, min_tiles), _SUBLANES)
    return int(max(_SUBLANES, min(tg, balanced)))


def log_regression_forward(x, weight, bias, *, lin: bool = False):
    """Pallas forward of log_regression.

    Args:
      x:      (B, D) input.
      weight: (1, D) (nn.Linear.weight convention) or (D,).
      bias:   (1,).
      lin:    selects the `(linear(x) > 0.5).float()` branch when True.

    Returns:
      (B, 1) float32 output.
    """
    assert x.ndim == 2, "expected (batch, features) input"
    B, D = x.shape
    itemsize = int(jnp.dtype(x.dtype).itemsize)
    compute_dtype = x.dtype if x.dtype in (jnp.bfloat16, jnp.float32) else jnp.float32
    w_itemsize = int(jnp.dtype(compute_dtype).itemsize)

    R = _choose_fold(B, D)
    G = B // R
    K = R * D

    # Free (copy-less) folded view of x, tiny resident operands — no extra HBM
    # pass over x in the wrapper.
    xf = x.reshape(G, K)
    w_row = weight.reshape(D).astype(jnp.float32)
    eye = jnp.eye(R, dtype=jnp.float32)
    # w_big[r*D + d, c] = w[d] if r == c else 0  (block-diagonal)
    w_big = (eye[:, None, :] * w_row[None, :, None]).reshape(K, R).astype(compute_dtype)
    b2 = bias.reshape(1, 1).astype(jnp.float32)

    folded_row_vmem_bytes = _round_up(K, _LANES) * itemsize   # account lane padding
    tg = _choose_group_tile(G, folded_row_vmem_bytes)
    num_tiles = pl.cdiv(G, tg)          # last block may be partial (masked writeback)

    kernel = functools.partial(_logreg_kernel, lin=lin)

    out = pl.pallas_call(
        kernel,
        out_shape=jax.ShapeDtypeStruct((G, R), jnp.float32),
        grid=(num_tiles,),
        in_specs=[
            pl.BlockSpec((tg, K), lambda i: (i, 0)),            # streamed x tile
            pl.BlockSpec((K, R), lambda i: (0, 0)),             # resident weight
            pl.BlockSpec(memory_space=pltpu.MemorySpace.SMEM),  # bias scalar
        ],
        out_specs=pl.BlockSpec((tg, R), lambda i: (i, 0)),
        compiler_params=pltpu.CompilerParams(
            dimension_semantics=("parallel",),                  # v7x: both TCs
        ),
        cost_estimate=pl.CostEstimate(
            flops=2 * B * R * D,
            transcendentals=0 if lin else 2 * B,
            bytes_accessed=B * D * itemsize + K * R * w_itemsize + B * 4,
        ),
    )(xf, w_big, b2)

    return out.reshape(B, 1)


if __name__ == "__main__":
    key = jax.random.PRNGKey(0)
    kx, kw, kb, kx2 = jax.random.split(key, 4)

    in_features = 32
    bound = 1.0 / (in_features ** 0.5)   # mimic nn.Linear uniform init
    weight = jax.random.uniform(kw, (1, in_features), jnp.float32, -bound, bound)
    bias = jax.random.uniform(kb, (1,), jnp.float32, -bound, bound)

    def ref_linear(xv):
        return xv @ weight.T + bias

    # Small non-128-aligned batch: exercises the R=2 fold and the partial final
    # block (no wrapper pad, masked writeback).
    batch = 10
    x = jax.random.normal(kx, (batch, in_features), dtype=jnp.float32)

    out = jax.block_until_ready(log_regression_forward(x, weight, bias, lin=False))
    ref = jax.nn.sigmoid(ref_linear(x))
    assert out.shape == (batch, 1)
    assert jnp.allclose(out, ref, atol=2e-3, rtol=2e-3)

    out_lin = jax.block_until_ready(log_regression_forward(x, weight, bias, lin=True))
    z_ref = ref_linear(x)
    ref_lin = (z_ref > 0.5).astype(jnp.float32)
    near_threshold = jnp.abs(z_ref - 0.5) <= 1e-2    # tolerate ties at the boundary
    assert bool(jnp.all((out_lin == ref_lin) | near_threshold))

    # Larger 128-aligned batch: R=64 fold (lane-dense MXU path), multi-step grid.
    batch2 = 4096
    x2 = jax.random.normal(kx2, (batch2, in_features), dtype=jnp.float32)
    out2 = jax.block_until_ready(log_regression_forward(x2, weight, bias, lin=False))
    ref2 = jax.nn.sigmoid(ref_linear(x2))
    assert out2.shape == (batch2, 1)
    assert jnp.allclose(out2, ref2, atol=2e-3, rtol=2e-3)

    print("KERNEL_OK")
</pallas_src>

<mosaic_0001>
module attributes {stable_mosaic.version = 11 : i64} {
  func.func @_logreg_kernel(%arg0: i32, %arg1: memref<8x64xf32, #tpu.memory_space<vmem>>, %arg2: memref<64x2xf32, #tpu.memory_space<vmem>>, %arg3: memref<1x1xf32, #tpu.memory_space<smem>>, %arg4: memref<8x2xf32, #tpu.memory_space<vmem>>) attributes {dimension_semantics = [#tpu.dimension_semantics<parallel>], iteration_bounds = array<i64: 1>, scalar_prefetch = 0 : i64, scratch_operands = 0 : i64, tpu.core_type = #tpu.core_type<tc>, window_params = [{transform_indices = @transform_0, window_bounds = array<i64: 8, 64>}, {pipeline_mode = #tpu.pipeline_mode<synchronous>, transform_indices = @transform_1, window_bounds = array<i64: 64, 2>}, {transform_indices = @transform_2, window_bounds = array<i64: 1, 1>}, {transform_indices = @transform_3, window_bounds = array<i64: 8, 2>}]} {
    %c0 = arith.constant 0 : index
    %c0_0 = arith.constant 0 : index
    %0 = vector.load %arg1[%c0, %c0_0] : memref<8x64xf32, #tpu.memory_space<vmem>>, vector<8x64xf32>
    %c0_1 = arith.constant 0 : index
    %c0_2 = arith.constant 0 : index
    %1 = vector.load %arg2[%c0_1, %c0_2] : memref<64x2xf32, #tpu.memory_space<vmem>>, vector<64x2xf32>
    %cst = arith.constant dense<0.000000e+00> : vector<8x2xf32>
    %2 = tpu.matmul %0, %1, %cst {dimension_numbers = #tpu.dot_dimension_numbers<[1], [0], [0], [1], [0, 0, 1, 1], [], []>} : vector<8x64xf32>, vector<64x2xf32>, vector<8x2xf32> -> vector<8x2xf32>
    %c0_3 = arith.constant 0 : index
    %c0_4 = arith.constant 0 : index
    %3 = memref.load %arg3[%c0_3, %c0_4] : memref<1x1xf32, #tpu.memory_space<smem>>
    %4 = vector.broadcast %3 : f32 to vector<8x2xf32>
    %5 = arith.addf %2, %4 : vector<8x2xf32>
    %cst_5 = arith.constant 0.000000e+00 : f32
    %6 = vector.broadcast %cst_5 : f32 to vector<8x2xf32>
    %7 = arith.subf %6, %5 : vector<8x2xf32>
    %8 = math.exp %7 : vector<8x2xf32>
    %cst_6 = arith.constant 1.000000e+00 : f32
    %9 = vector.broadcast %cst_6 : f32 to vector<8x2xf32>
    %10 = arith.addf %9, %8 : vector<8x2xf32>
    %cst_7 = arith.constant 1.000000e+00 : f32
    %11 = vector.broadcast %cst_7 : f32 to vector<8x2xf32>
    %12 = arith.divf %11, %10 : vector<8x2xf32>
    %c0_8 = arith.constant 0 : index
    %c0_9 = arith.constant 0 : index
    %13 = vector.load %arg4[%c0_8, %c0_9] : memref<8x2xf32, #tpu.memory_space<vmem>>, vector<8x2xf32>
    tpu.vector_store %arg4[%c0_8, %c0_9], %12 {strides = array<i32>} : memref<8x2xf32, #tpu.memory_space<vmem>>, vector<8x2xf32>,
    return
  }
  func.func @transform_0(%arg0: i32) -> (i32, i32) {
    %c0_i32 = arith.constant 0 : i32
    %c0_i32_0 = arith.constant 0 : i32
    return %arg0, %c0_i32 : i32, i32
  }
  func.func @transform_1(%arg0: i32) -> (i32, i32) {
    %c0_i32 = arith.constant 0 : i32
    %c0_i32_0 = arith.constant 0 : i32
    %c0_i32_1 = arith.constant 0 : i32
    return %c0_i32, %c0_i32_0 : i32, i32
  }
  func.func @transform_2(%arg0: i32) -> (i32, i32) {
    %c0_i32 = arith.constant 0 : i32
    %c0_i32_0 = arith.constant 0 : i32
    %c0_i32_1 = arith.constant 0 : i32
    return %c0_i32, %c0_i32_0 : i32, i32
  }
  func.func @transform_3(%arg0: i32) -> (i32, i32) {
    %c0_i32 = arith.constant 0 : i32
    %c0_i32_0 = arith.constant 0 : i32
    return %arg0, %c0_i32 : i32, i32
  }
}

</mosaic_0001>

<llo_original>
// kernel: tpu_custom_call.1
$region0: #{tpu_custom_call.1}
  #allocation0 [shape = 'u32[]', space=smem, size = 0x4, offset = 0x4, fixed_abs, tag = 'smem constant byte address 0x4 - core index']
  #allocation1 [shape = 'u32[144,128]{1,0:T(1,128)}', space=vmem, size = 0x12000, scoped, tag = 'internal scratch']
  #allocation2 [shape = 'f32[1,1]{1,0:T(1,128)S(6)}', space=smem, size = 0x200, scoped, tag = 'scoped memory for tpu_custom_call.1']
  %s0 = inlined_call_operand.vmem [shape: f32[5,64], index: 0, kind: input, shape index: {}]
  %s1 = inlined_call_operand.vmem [shape: f32[64,2], index: 1, kind: input, shape index: {}]
  %s2 = inlined_call_operand.<no memory space> [shape: f32[1,1], index: 2, kind: input, shape index: {}]
  %s3 = inlined_call_operand.vmem [shape: f32[5,2], index: 3, kind: output, shape index: {}]
  %s4 = sld [smem:[#allocation0]]
  $region22: #{tpu_custom_call.1} parent=0
    _
  %s6 = ssub.s32 1, %s4
  %s7 = scalar_select 0, %s6, %s4
  %8 = sst [smem:[#allocation2]] %s2
  // Predicated region
  $region2: #{tpu_custom_call.1} parent=0 // pred_check
    _
  $region3: #{tpu_custom_call.1} parent=0 // pred_check_branch
    %10 = sbr.rel (0) target = $region5
  $region4: #{tpu_custom_call.1} parent=0 // pred_region
    _
  $region5: #{tpu_custom_call.1} parent=0 // pred_fallthru
    _
  // Predicated region
  $region6: #{tpu_custom_call.1} parent=0 // pred_check
    _
  $region7: #{tpu_custom_call.1} parent=0 // pred_check_branch
    %12 = sbr.rel (0) target = $region9
  $region8: #{tpu_custom_call.1} parent=0 // pred_region
    _
  $region9: #{tpu_custom_call.1} parent=0 // pred_fallthru
    _
  // Predicated region
  $region10: #{tpu_custom_call.1} parent=0 // pred_check
    _
  $region11: #{tpu_custom_call.1} parent=0 // pred_check_branch
    %14 = sbr.rel (0) target = $region13
  $region12: #{tpu_custom_call.1} parent=0 // pred_region
    _
  $region13: #{tpu_custom_call.1} parent=0 // pred_fallthru
    _
  %v15 = vld [vmem:[%s0] sm:$0xff]
  %v16 = vld [vmem:[%s1] sm:$0xff]
  %v17 = vld [vmem:[%s1 + $0x8] sm:$0xff]
  %v18 = vld [vmem:[%s1 + $0x10] sm:$0xff]
  %v19 = vld [vmem:[%s1 + $0x18] sm:$0xff]
  %v20 = vld [vmem:[%s1 + $0x20] sm:$0xff]
  %v21 = vld [vmem:[%s1 + $0x28] sm:$0xff]
  %v22 = vld [vmem:[%s1 + $0x30] sm:$0xff]
  %v23 = vld [vmem:[%s1 + $0x38] sm:$0xff]
  %s24 = sld [smem:[#allocation2]]
  %v25 = vstv %s24
  %vm26 = vcmask 523264
  %v28 = vsel %vm26, %v15, 0
  %30 = vmatprep.subr.mxu0 0.0
  %31 = vmatpush1.msra.mxu0 %v16
  %32 = vmatprep.subr.mxu0 0.0
  %33 = vmatpush1.msra.mxu0 %v17
  %34 = vmatprep.subr.mxu0 0.0
  %35 = vmatpush1.msra.mxu0 %v18
  %36 = vmatprep.subr.mxu0 0.0
  %37 = vmatpush1.msra.mxu0 %v19
  %38 = vmatprep.subr.mxu0 0.0
  %39 = vmatpush1.msra.mxu0 %v20
  %40 = vmatprep.subr.mxu0 0.0
  %41 = vmatpush1.msra.mxu0 %v21
  %42 = vmatprep.subr.mxu0 0.0
  %43 = vmatpush1.msra.mxu0 %v22
  %44 = vmatprep.subr.mxu0 0.0
  %45 = vmatpush1.msra.mxu0 %v23
  %46 = vmatprep.subr.mxu0 0.0
  %47 = vmatpush1.msra.mxu0 0.0
  %48 = vmatprep.subr.mxu0 0.0
  %49 = vmatpush1.msra.mxu0 0.0
  %50 = vmatprep.subr.mxu0 0.0
  %51 = vmatpush1.msra.mxu0 0.0
  %52 = vmatprep.subr.mxu0 0.0
  %53 = vmatpush1.msra.mxu0 0.0
  %54 = vmatprep.subr.mxu0 0.0
  %55 = vmatpush1.msra.mxu0 0.0
  %56 = vmatprep.subr.mxu0 0.0
  %57 = vmatpush1.msra.mxu0 0.0
  %58 = vmatprep.subr.mxu0 0.0
  %59 = vmatpush1.msra.mxu0 0.0
  %60 = vmatprep.subr.mxu0 0.0
  %61 = vmatpush1.msra.mxu0 0.0
  %62 = vmatprep.subr.mxu0 0.0
  %63 = vmatpush1.msra.mxu0 0.0
  %64 = vmatprep.subr.mxu0 0.0
  %65 = vmatpush1.msra.mxu0 0.0
  %66 = vmatprep.subr.mxu0 0.0
  %67 = vmatpush1.msra.mxu0 0.0
  %68 = vmatprep.subr.mxu0 0.0
  %69 = vmatpush1.msra.mxu0 0.0
  %70 = vmatprep.subr.mxu0 0.0
  %71 = vmatpush1.msra.mxu0 0.0
  %72 = vmatprep.subr.mxu0 0.0
  %73 = vmatpush1.msra.mxu0 0.0
  %74 = vmatprep.subr.mxu0 0.0
  %75 = vmatpush1.msra.mxu0 0.0
  %76 = vmatprep.subr.mxu0 0.0
  %77 = vmatpush1.msra.mxu0 0.0
  %78 = vmatprep.subr.mxu0 0.0
  %79 = vmatpush1.msra.mxu0 0.0
  %80 = vmatprep.subr.mxu0 0.0
  %81 = vmatpush1.msra.mxu0 0.0
  %82 = vmatprep.subr.mxu0 0.0
  %83 = vmatpush1.msra.mxu0 0.0
  %84 = vmatprep.subr.mxu0 0.0
  %85 = vmatpush1.msra.mxu0 0.0
  %86 = vmatprep.subr.mxu0 0.0
  %87 = vmatpush1.msra.mxu0 0.0
  %88 = vmatprep.subr.mxu0 0.0
  %89 = vmatpush1.msra.mxu0 0.0
  %90 = vmatprep.subr.mxu0 0.0
  %91 = vmatpush1.msra.mxu0 0.0
  %92 = vmatprep.subr.mxu0 0.0
  %93 = vmatpush1.msra.mxu0 0.0
  %94 = vmatprep.mubr.f32.mxu0 0.0
  %95 = vmatmul.mubr.f32.gmra.mrb[0].mxu0 %v28
  %v96 = vpop.f32.mrb[0].mxu0
  %v97 = vadd.f32 %v25, %v96
  %v98 = vpop.f32.mrb[0].mxu0
  %99 = vdwg.mxu0
  %v100 = vsub.f32 0.0, %v97
  %v101 = vmul.f32 %v100, 1.442695
  %v102 = vpow.pop %v101
  %v103 = vadd.f32 %v102, 1.0
  %v104 = vrcp.pop %v103
  %v105 = vmul.f32 1.0, %v104
  %vm106 = vcmask 15360
  %107 = vst.msk [vmem:[%s3] sm:$0xff] %vm106, %v105
  // Predicated region
  $region14: #{tpu_custom_call.1} parent=0 // pred_check
    _
  $region15: #{tpu_custom_call.1} parent=0 // pred_check_branch
    %109 = sbr.rel (0) target = $region17
  $region16: #{tpu_custom_call.1} parent=0 // pred_region
    _
  $region17: #{tpu_custom_call.1} parent=0 // pred_fallthru
    _
  // Predicated region
  $region18: #{tpu_custom_call.1} parent=0 // pred_check
    _
  $region19: #{tpu_custom_call.1} parent=0 // pred_check_branch
    %111 = sbr.rel (0) target = $region21
  $region20: #{tpu_custom_call.1} parent=0 // pred_region
    _
  $region21: #{tpu_custom_call.1} parent=0 // pred_fallthru
    _

</llo_original>
